<compile_context>
chip_gen: v7x
topology: tpu7x:2x2x1
jax: 0.10.0
libtpu: 0.0.40
codegen_flags: <defaults>
</compile_context>

<pallas_src>
import functools

import jax
import jax.numpy as jnp
from jax import lax
from jax.experimental import pallas as pl
from jax.experimental.pallas import tpu as pltpu


_MIN_PALLAS_ELEMENTS = 4096       # below this, launch overhead dominates
_MAX_TILE_N = 16384               # rows per batch tile (amortizes per-step cost)
_MIN_SPLIT_ROWS = 1024            # only force >=2 tiles if each gets this many rows
_LANE = 128


def _sublane(itemsize: int) -> int:
    # Sublane packing: 8 rows for 32-bit, 16 for 16-bit, 32 for 8-bit dtypes.
    return 8 * max(1, 4 // int(itemsize))


def _vmem_limit_bytes() -> int:
    """Per-generation scoped-VMEM limit (~half of physical VMEM, with floor/cap)."""
    cap = None
    try:
        cap = getattr(pltpu.get_tpu_info(), "vmem_capacity_bytes", None)
    except Exception:
        cap = None
    if not cap:
        cap = 64 * 1024 * 1024                      # conservative: v7x physical VMEM
    return int(max(32 * 1024 * 1024, min(cap // 2, 96 * 1024 * 1024)))


def _pick_tile_n(n: int, c: int, itemsize: int, sublane: int, vmem_budget: int) -> int:
    """Largest batch tile that fits the VMEM budget (incl. f32 temporaries)."""
    # Per batch row:
    #   * logits input tile, double-buffered, in its wire dtype
    #   * ~4 full-C f32 in-kernel temporaries (widen / shifted / exp / where)
    #   * lane-padded (x128) int32 target block, double-buffered
    bytes_per_row = 2 * c * itemsize + 4 * c * 4 + 2 * _LANE * 4
    tile = max(sublane, vmem_budget // bytes_per_row)
    tile = min(tile, _MAX_TILE_N)
    if tile >= n:
        if n >= 2 * _MIN_SPLIT_ROWS:
            # Large N: keep >= 2 grid steps so both v7x TensorCores get a tile
            # (free on single-TC v5e/v6e where parallel vs arbitrary is a no-op).
            half = -(-n // 2)
            return -(-half // sublane) * sublane
        return n                                    # single full block (layout-legal)
    return max(sublane, (tile // sublane) * sublane)


def _cross_entropy_tile_kernel(logits_ref, target_ref, loss_ref, *,
                               n_total, tile_n, need_mask):
    """One batch tile: sum_r -log_softmax(logits[r])[target[r]] (masked rows -> 0)."""
    logits = logits_ref[...].astype(jnp.float32)               # (tile_n, C)
    tgt = target_ref[...]                                       # (tile_n, 1) int32
    tn, c = logits.shape

    # Numerically stable log-softmax pieces; the +row_max terms cancel in
    # (lse - target_logit), so everything downstream uses `shifted`.
    row_max = jnp.max(logits, axis=-1, keepdims=True)           # (tile_n, 1)
    shifted = logits - row_max                                   # (tile_n, C), <= 0
    lse_shifted = jnp.log(jnp.sum(jnp.exp(shifted), axis=-1, keepdims=True))

    # Gather the target-class (shifted) logit via an iota == target mask.
    cls_ids = lax.broadcasted_iota(jnp.int32, (tn, c), 1)
    tgt_shifted = jnp.sum(jnp.where(cls_ids == tgt, shifted, 0.0),
                          axis=-1, keepdims=True)                # (tile_n, 1)

    per_example = lse_shifted - tgt_shifted                      # (tile_n, 1)

    if need_mask:
        # Rows past the true batch size (partial last tile) hold garbage,
        # possibly NaN; they MUST be zeroed before the partial sum below.
        row_ids = (pl.program_id(0) * tile_n
                   + lax.broadcasted_iota(jnp.int32, (tn, 1), 0))
        per_example = jnp.where(row_ids < n_total, per_example, 0.0)

    # Single per-tile partial sum: one tiny store instead of tile_n/8 masked
    # lane-1 stores and an (N,1) HBM writeback + extra XLA reduction pass.
    loss_ref[...] = jnp.sum(per_example, axis=0, keepdims=True).reshape(1, 1, 1)


def _reference_cross_entropy(logits, target):
    logits = logits.astype(jnp.float32)
    lse = jax.nn.logsumexp(logits, axis=-1)
    tgt = jnp.take_along_axis(logits, target.astype(jnp.int32)[:, None], axis=-1)[:, 0]
    return jnp.mean(lse - tgt)


def cross_entropy_loss(logits: jax.Array, target: jax.Array, *,
                       tile_n: int | None = None,
                       force_pallas: bool = False) -> jax.Array:
    """Equivalent of nn.CrossEntropyLoss()(logits, target) (mean reduction).

    logits: [N, C] float array of raw scores (f32 or bf16)
    target: [N] integer class indices
    returns: scalar float32 mean loss
    """
    n, c = logits.shape
    target = target.astype(jnp.int32)

    if not force_pallas and n * c < _MIN_PALLAS_ELEMENTS:
        # Toy sizes: kernel launch + per-step overhead dominates; use fused XLA.
        return _reference_cross_entropy(logits, target)

    itemsize = logits.dtype.itemsize
    sublane = _sublane(itemsize)
    vmem_limit = _vmem_limit_bytes()

    if tile_n is None:
        tile_n = _pick_tile_n(n, c, itemsize, sublane, vmem_limit // 2)
    tile_n = min(tile_n, n)
    if tile_n < n and tile_n % sublane != 0:
        raise ValueError(f"tile_n={tile_n} must be a multiple of {sublane} or >= N")

    num_tiles = pl.cdiv(n, tile_n)
    need_mask = (n % tile_n) != 0
    target_2d = target.reshape(n, 1)

    kernel = functools.partial(_cross_entropy_tile_kernel,
                               n_total=n, tile_n=tile_n, need_mask=need_mask)

    cost = pl.CostEstimate(
        flops=6 * n * c,
        transcendentals=n * c + n,                      # exp per element + log per row
        bytes_accessed=n * c * itemsize + n * 4 + num_tiles * 4,
    )

    partial_sums = pl.pallas_call(
        kernel,
        out_shape=jax.ShapeDtypeStruct((num_tiles, 1, 1), jnp.float32),
        grid=(num_tiles,),
        in_specs=[
            pl.BlockSpec((tile_n, c), lambda i: (i, 0)),    # logits tile, full C
            pl.BlockSpec((tile_n, 1), lambda i: (i, 0)),    # matching target rows
        ],
        out_specs=pl.BlockSpec((1, 1, 1), lambda i: (i, 0, 0)),  # per-tile partial sum
        compiler_params=pltpu.CompilerParams(
            # No carried state across tiles -> parallel (v7x megacore sharding).
            dimension_semantics=("parallel",),
            vmem_limit_bytes=vmem_limit,
        ),
        cost_estimate=cost,
    )(logits, target_2d)

    # Global mean over the true N (masked rows contribute 0 to the partial sums).
    return jnp.sum(partial_sums) / jnp.float32(n)


if __name__ == "__main__":
    key = jax.random.PRNGKey(0)
    k_logits, k_target = jax.random.split(key)

    # MNIST-style classifier head: 10 classes; batch sized to exercise
    # multi-tile pipelining plus a partial (masked) last tile.
    N, C = 520, 10
    logits = jax.random.normal(k_logits, (N, C), dtype=jnp.float32)
    target = jax.random.randint(k_target, (N,), 0, C, dtype=jnp.int32)

    ref = _reference_cross_entropy(logits, target)

    # Explicit small tile: 4 full tiles + 1 partial (masked) tile.
    loss = cross_entropy_loss(logits, target, tile_n=128, force_pallas=True)
    jax.block_until_ready(loss)
    assert jnp.allclose(loss, ref, atol=1e-5, rtol=1e-5), (loss, ref)

    # Auto-picked tile (single full block at this size).
    loss_auto = cross_entropy_loss(logits, target, force_pallas=True)
    jax.block_until_ready(loss_auto)
    assert jnp.allclose(loss_auto, ref, atol=1e-5, rtol=1e-5), (loss_auto, ref)

    # bf16 wire dtype (16-row sublane rounding), multi-tile + partial last tile.
    logits_bf16 = logits.astype(jnp.bfloat16)
    ref_bf16 = _reference_cross_entropy(logits_bf16, target)
    loss_bf16 = cross_entropy_loss(logits_bf16, target, tile_n=256, force_pallas=True)
    jax.block_until_ready(loss_bf16)
    assert jnp.allclose(loss_bf16, ref_bf16, atol=1e-2, rtol=1e-2), (loss_bf16, ref_bf16)

    # Toy shapes dispatch to the pure-JAX path (kernel launch not worth it).
    small = cross_entropy_loss(logits[:8], target[:8])
    small_ref = _reference_cross_entropy(logits[:8], target[:8])
    assert jnp.allclose(small, small_ref, atol=1e-5, rtol=1e-5), (small, small_ref)

    print("KERNEL_OK")
</pallas_src>

<mosaic_0001>
module attributes {stable_mosaic.version = 11 : i64} {
  func.func @_cross_entropy_tile_kernel(%arg0: i32, %arg1: memref<128x10xf32, #tpu.memory_space<vmem>>, %arg2: memref<128x1xi32, #tpu.memory_space<vmem>>, %arg3: memref<1x1x1xf32, #tpu.memory_space<vmem>>) attributes {dimension_semantics = [#tpu.dimension_semantics<parallel>], iteration_bounds = array<i64: 5>, scalar_prefetch = 0 : i64, scratch_operands = 0 : i64, tpu.core_type = #tpu.core_type<tc>, window_params = [{transform_indices = @transform_0, window_bounds = array<i64: 128, 10>}, {transform_indices = @transform_1, window_bounds = array<i64: 128, 1>}, {transform_indices = @transform_2, window_bounds = array<i64: 1, 1, 1>}]} {
    %c0 = arith.constant 0 : index
    %c0_0 = arith.constant 0 : index
    %0 = vector.load %arg1[%c0, %c0_0] : memref<128x10xf32, #tpu.memory_space<vmem>>, vector<128x10xf32>
    %c0_1 = arith.constant 0 : index
    %c0_2 = arith.constant 0 : index
    %1 = vector.load %arg2[%c0_1, %c0_2] : memref<128x1xi32, #tpu.memory_space<vmem>>, vector<128x1xi32>
    %cst = arith.constant dense<0xFF800000> : vector<128xf32>
    %2 = vector.multi_reduction <maximumf>, %0, %cst [1] : vector<128x10xf32> to vector<128xf32>
    %3 = vector.shape_cast %2 : vector<128xf32> to vector<128x1xf32>
    %4 = vector.broadcast %3 : vector<128x1xf32> to vector<128x10xf32>
    %5 = arith.subf %0, %4 : vector<128x10xf32>
    %6 = math.exp %5 : vector<128x10xf32>
    %cst_3 = arith.constant dense<0.000000e+00> : vector<128xf32>
    %7 = vector.multi_reduction <add>, %6, %cst_3 [1] : vector<128x10xf32> to vector<128xf32>
    %8 = vector.shape_cast %7 : vector<128xf32> to vector<128x1xf32>
    %9 = math.log %8 : vector<128x1xf32>
    %10 = tpu.iota {dimensions = array<i32: 1>} : vector<128x10xi32>
    %11 = vector.broadcast %1 : vector<128x1xi32> to vector<128x10xi32>
    %12 = arith.cmpi eq, %10, %11 : vector<128x10xi32>
    %cst_4 = arith.constant 0.000000e+00 : f32
    %13 = vector.broadcast %cst_4 : f32 to vector<128x10xf32>
    %14 = arith.select %12, %5, %13 : vector<128x10xi1>, vector<128x10xf32>
    %cst_5 = arith.constant dense<0.000000e+00> : vector<128xf32>
    %15 = vector.multi_reduction <add>, %14, %cst_5 [1] : vector<128x10xf32> to vector<128xf32>
    %16 = vector.shape_cast %15 : vector<128xf32> to vector<128x1xf32>
    %17 = arith.subf %9, %16 : vector<128x1xf32>
    %c128_i32 = arith.constant 128 : i32
    %18 = arith.muli %arg0, %c128_i32 : i32
    %19 = tpu.iota {dimensions = array<i32: 0>} : vector<128x1xi32>
    %20 = vector.broadcast %18 : i32 to vector<128x1xi32>
    %21 = arith.addi %20, %19 : vector<128x1xi32>
    %c520_i32 = arith.constant 520 : i32
    %22 = vector.broadcast %c520_i32 : i32 to vector<128x1xi32>
    %23 = arith.cmpi slt, %21, %22 : vector<128x1xi32>
    %cst_6 = arith.constant 0.000000e+00 : f32
    %24 = vector.broadcast %cst_6 : f32 to vector<128x1xf32>
    %25 = arith.select %23, %17, %24 : vector<128x1xi1>, vector<128x1xf32>
    %cst_7 = arith.constant dense<0.000000e+00> : vector<1xf32>
    %26 = vector.multi_reduction <add>, %25, %cst_7 [0] : vector<128x1xf32> to vector<1xf32>
    %27 = vector.shape_cast %26 : vector<1xf32> to vector<1x1xf32>
    %28 = vector.shape_cast %27 : vector<1x1xf32> to vector<1x1x1xf32>
    %c0_8 = arith.constant 0 : index
    %c0_9 = arith.constant 0 : index
    %c0_10 = arith.constant 0 : index
    %29 = vector.load %arg3[%c0_8, %c0_9, %c0_10] : memref<1x1x1xf32, #tpu.memory_space<vmem>>, vector<1x1x1xf32>
    tpu.vector_store %arg3[%c0_8, %c0_9, %c0_10], %28 {strides = array<i32>} : memref<1x1x1xf32, #tpu.memory_space<vmem>>, vector<1x1x1xf32>,
    return
  }
  func.func @transform_0(%arg0: i32) -> (i32, i32) {
    %c0_i32 = arith.constant 0 : i32
    %c0_i32_0 = arith.constant 0 : i32
    return %arg0, %c0_i32 : i32, i32
  }
  func.func @transform_1(%arg0: i32) -> (i32, i32) {
    %c0_i32 = arith.constant 0 : i32
    %c0_i32_0 = arith.constant 0 : i32
    return %arg0, %c0_i32 : i32, i32
  }
  func.func @transform_2(%arg0: i32) -> (i32, i32, i32) {
    %c0_i32 = arith.constant 0 : i32
    %c0_i32_0 = arith.constant 0 : i32
    %c0_i32_1 = arith.constant 0 : i32
    return %arg0, %c0_i32, %c0_i32_0 : i32, i32, i32
  }
}

</mosaic_0001>

<llo_original>
// kernel: tpu_custom_call.1
$region0: #{tpu_custom_call.1}
  #allocation0 [shape = 'u32[]', space=smem, size = 0x4, offset = 0x4, fixed_abs, tag = 'smem constant byte address 0x4 - core index']
  #allocation1 [shape = 'u32[144,128]{1,0:T(1,128)}', space=vmem, size = 0x12000, scoped, tag = 'internal scratch']
  %s0 = inlined_call_operand.vmem [shape: f32[520,10], index: 0, kind: input, shape index: {}]
  %s1 = inlined_call_operand.vmem [shape: s32[520,1], index: 1, kind: input, shape index: {}]
  %s2 = inlined_call_operand.vmem [shape: f32[5,1,1], index: 2, kind: output, shape index: {}]
  %s3 = sld [smem:[#allocation0]]
  $region41: #{tpu_custom_call.1} parent=0
    _
  %s5 = ssub.s32 1, %s3
  %s6 = scalar_select 0, %s5, %s3
  loop: start=0, step=1, limit=7
  $region2: #{tpu_custom_call.1} parent=0 // loop_pre_header
    _
  $region3: #{tpu_custom_call.1} parent=0 // loop_header
    %s8 = sphi 0, %s12
    %p9 = scmp.ge.s32.totalorder %s8, 7
    %s18 = sphi 0, %s20
    %s21 = sphi 0, %s18
    %s22 = sphi 0, %s21
    %s38 = sphi 0, %s22
    %s44 = sphi 0, %s46
    %s47 = sphi 0, %s44
    %s48 = sphi 0, %s47
    %s64 = sphi 0, %s48
    %s70 = sphi 0, %s72
    %s73 = sphi 0, %s70
    %s74 = sphi 0, %s73
    %s90 = sphi 0, %s74
  $region4: #{tpu_custom_call.1} parent=0 // loop_header_branch
    %11 = sbr.rel (%p9) target = $region8
  $region5: #{tpu_custom_call.1} parent=0 // loop_body
    %s13 = ssub.s32 %s8, 1
    %s14 = ssub.s32 %s8, 2
    %s15 = sadd.s32 %s8, 1
    %s16 = ssub.s32 %s8, %s15
    %p17 = scmp.eq.s32.totalorder %s16, 0
    %s19 = sadd.s32 %s18, 1
    %s20 = scalar_select %p17, %s18, %s19
    %p23 = pneg %p17
    %p24 = scmp.eq.s32.totalorder %s8, 4
    %p25 = por %p23, %p24
    %p26 = scmp.ne.s32.totalorder %s18, %s21
    %p27 = scmp.eq.s32.totalorder %s8, 0
    %p28 = por %p26, %p27
    %p29 = scmp.ne.s32.totalorder %s18, %s21
    %p30 = scmp.eq.s32.totalorder %s13, 4
    %p31 = por %p29, %p30
    %p32 = scmp.ne.s32.totalorder %s21, %s22
    %p33 = scmp.eq.s32.totalorder %s13, 0
    %p34 = por %p32, %p33
    %p35 = scmp.ne.s32.totalorder %s21, %s22
    %p36 = scmp.eq.s32.totalorder %s14, 4
    %p37 = por %p35, %p36
    %p39 = scmp.ne.s32.totalorder %s22, %s38
    %p40 = scmp.eq.s32.totalorder %s14, 0
    %p41 = por %p39, %p40
    %s42 = ssub.s32 %s8, %s15
    %p43 = scmp.eq.s32.totalorder %s42, 0
    %s45 = sadd.s32 %s44, 1
    %s46 = scalar_select %p43, %s44, %s45
    %p49 = pneg %p43
    %p50 = scmp.eq.s32.totalorder %s8, 4
    %p51 = por %p49, %p50
    %p52 = scmp.ne.s32.totalorder %s44, %s47
    %p53 = scmp.eq.s32.totalorder %s8, 0
    %p54 = por %p52, %p53
    %p55 = scmp.ne.s32.totalorder %s44, %s47
    %p56 = scmp.eq.s32.totalorder %s13, 4
    %p57 = por %p55, %p56
    %p58 = scmp.ne.s32.totalorder %s47, %s48
    %p59 = scmp.eq.s32.totalorder %s13, 0
    %p60 = por %p58, %p59
    %p61 = scmp.ne.s32.totalorder %s47, %s48
    %p62 = scmp.eq.s32.totalorder %s14, 4
    %p63 = por %p61, %p62
    %p65 = scmp.ne.s32.totalorder %s48, %s64
    %p66 = scmp.eq.s32.totalorder %s14, 0
    %p67 = por %p65, %p66
    %s68 = ssub.s32 %s8, %s15
    %p69 = scmp.eq.s32.totalorder %s68, 0
    %s71 = sadd.s32 %s70, 1
    %s72 = scalar_select %p69, %s70, %s71
    %p75 = pneg %p69
    %p76 = scmp.eq.s32.totalorder %s8, 4
    %p77 = por %p75, %p76
    %p78 = scmp.ne.s32.totalorder %s70, %s73
    %p79 = scmp.eq.s32.totalorder %s8, 0
    %p80 = por %p78, %p79
    %p81 = scmp.ne.s32.totalorder %s70, %s73
    %p82 = scmp.eq.s32.totalorder %s13, 4
    %p83 = por %p81, %p82
    %p84 = scmp.ne.s32.totalorder %s73, %s74
    %p85 = scmp.eq.s32.totalorder %s13, 0
    %p86 = por %p84, %p85
    %p87 = scmp.ne.s32.totalorder %s73, %s74
    %p88 = scmp.eq.s32.totalorder %s14, 4
    %p89 = por %p87, %p88
    %p91 = scmp.ne.s32.totalorder %s74, %s90
    %p92 = scmp.eq.s32.totalorder %s14, 0
    %p93 = por %p91, %p92
    %p94 = scmp.le.s32.totalorder 1, %s8
    %p95 = scmp.lt.s32.totalorder %s8, 6
    %p96 = pnand %p94, %p95
    %p97 = pneg %p96
    // Predicated region
    $region9: #{tpu_custom_call.1} parent=5 // pred_check
      _
    $region10: #{tpu_custom_call.1} parent=5 // pred_check_branch
      %99 = sbr.rel (%p96) target = $region12
    $region11: #{tpu_custom_call.1} parent=5 // pred_region
      %s100 = ssub.s32 %s8, 1
    $region12: #{tpu_custom_call.1} parent=5 // pred_fallthru
      _
    %p101 = scmp.lt.s32.totalorder %s8, 5
    // Predicated region
    $region13: #{tpu_custom_call.1} parent=5 // pred_check
      %p102 = pneg %p101
    $region14: #{tpu_custom_call.1} parent=5 // pred_check_branch
      %104 = sbr.rel (%p102) target = $region16
    $region15: #{tpu_custom_call.1} parent=5 // pred_region
      // Predicated region
      $region17: #{tpu_custom_call.1} parent=15 // pred_check
        %p105 = pneg %p28
      $region18: #{tpu_custom_call.1} parent=15 // pred_check_branch
        %107 = sbr.rel (%p105) target = $region20
      $region19: #{tpu_custom_call.1} parent=15 // pred_region
        %s108 = smul.u32 16, %s8
        %s109 = ssub.s32 65, %s108
        %p110 = scmp.lt.s32.totalorder %s109, 16
        %s111 = scalar_select %p110, %s109, 16
        %s112 = smul.u32 128, %s111
        %p113 = scmp.lt.s32.totalorder %s108, 64
        %s114 = scalar_select %p113, %s108, 64
        %s115 = smul.addr %s114, 8
        %s116 = scalar_lea.vmem %s0, %s115
        %s117 = smul.u32 16, %s8
        %s118 = ssub.s32 65, %s117
        %p119 = scmp.lt.s32.totalorder %s118, 16
        %s120 = scalar_select %p119, %s118, 16
        %s121 = smul.u32 128, %s120
      $region20: #{tpu_custom_call.1} parent=15 // pred_fallthru
        _
      // Predicated region
      $region21: #{tpu_custom_call.1} parent=15 // pred_check
        %p122 = pneg %p54
      $region22: #{tpu_custom_call.1} parent=15 // pred_check_branch
        %124 = sbr.rel (%p122) target = $region24
      $region23: #{tpu_custom_call.1} parent=15 // pred_region
        %s125 = smul.u32 16, %s8
        %s126 = ssub.s32 65, %s125
        %p127 = scmp.lt.s32.totalorder %s126, 16
        %s128 = scalar_select %p127, %s126, 16
        %s129 = smul.u32 128, %s128
        %p130 = scmp.lt.s32.totalorder %s125, 64
        %s131 = scalar_select %p130, %s125, 64
        %s132 = smul.addr %s131, 8
        %s133 = scalar_lea.vmem %s1, %s132
        %s134 = smul.u32 16, %s8
        %s135 = ssub.s32 65, %s134
        %p136 = scmp.lt.s32.totalorder %s135, 16
        %s137 = scalar_select %p136, %s135, 16
        %s138 = smul.u32 128, %s137
      $region24: #{tpu_custom_call.1} parent=15 // pred_fallthru
        _
    $region16: #{tpu_custom_call.1} parent=5 // pred_fallthru
      _
    %p139 = scmp.le.s32.totalorder 1, %s8
    %p140 = scmp.lt.s32.totalorder %s8, 6
    %p141 = pnand %p139, %p140
    %p142 = pneg %p141
    // Predicated region
    $region25: #{tpu_custom_call.1} parent=5 // pred_check
      _
    $region26: #{tpu_custom_call.1} parent=5 // pred_check_branch
      %144 = sbr.rel (%p141) target = $region28
    $region27: #{tpu_custom_call.1} parent=5 // pred_region
      %s145 = ssub.s32 %s8, 1
      %s146 = smul.u32 16, %s13
      %s147 = ssub.s32 65, %s146
      %p148 = scmp.lt.s32.totalorder %s147, 16
      %s149 = scalar_select %p148, %s147, 16
      %s150 = smul.u32 128, %s149
      %p151 = scmp.lt.s32.totalorder %s146, 64
      %s152 = scalar_select %p151, %s146, 64
      %s153 = smul.addr %s152, 8
      %s154 = scalar_lea.vmem %s0, %s153
      %p155 = pneg %p34
      %p156 = pneg %p31
      %s157 = smul.u32 16, %s13
      %s158 = ssub.s32 65, %s157
      %p159 = scmp.lt.s32.totalorder %s158, 16
      %s160 = scalar_select %p159, %s158, 16
      %s161 = smul.u32 128, %s160
      %p162 = scmp.lt.s32.totalorder %s157, 64
      %s163 = scalar_select %p162, %s157, 64
      %s164 = smul.addr %s163, 8
      %s165 = scalar_lea.vmem %s1, %s164
      %p166 = pneg %p60
      %p167 = pneg %p57
      %p168 = pneg %p86
      %p169 = pneg %p83
      %p170 = scmp.lt.s32.totalorder %s13, 4
      %s171 = scalar_select %p170, %s13, 4
      %s172 = scalar_lea.vmem %s2, %s171
      %s173 = smul.u32 16, %s13
      %s174 = ssub.s32 65, %s173
      %p175 = scmp.lt.s32.totalorder %s174, 16
      %s176 = scalar_select %p175, %s174, 16
      %s177 = smul.u32 128, %s176
      %p178 = scmp.lt.s32.totalorder %s173, 64
      %s179 = scalar_select %p178, %s173, 64
      %s180 = smul.addr %s179, 8
      %s181 = scalar_lea.vmem %s0, %s180
      %s182 = smul.u32 16, %s13
      %s183 = ssub.s32 65, %s182
      %p184 = scmp.lt.s32.totalorder %s183, 16
      %s185 = scalar_select %p184, %s183, 16
      %s186 = smul.u32 128, %s185
      %s187 = smul.u32 16, %s13
      %s188 = ssub.s32 65, %s187
      %p189 = scmp.lt.s32.totalorder %s188, 16
      %s190 = scalar_select %p189, %s188, 16
      %s191 = smul.u32 128, %s190
      %p192 = scmp.lt.s32.totalorder %s187, 64
      %s193 = scalar_select %p192, %s187, 64
      %s194 = smul.addr %s193, 8
      %s195 = scalar_lea.vmem %s1, %s194
      %s196 = smul.u32 16, %s13
      %s197 = ssub.s32 65, %s196
      %p198 = scmp.lt.s32.totalorder %s197, 16
      %s199 = scalar_select %p198, %s197, 16
      %s200 = smul.u32 128, %s199
      %p201 = scmp.lt.s32.totalorder %s13, 4
      %s202 = scalar_select %p201, %s13, 4
      %s203 = scalar_lea.vmem %s2, %s202
      %v204 = vld [vmem:[%s181] sm:$0xff]
      %v205 = vld [vmem:[%s181 + $0x8] sm:$0xff]
      %v206 = vld [vmem:[%s181 + $0x10] sm:$0xff]
      %v207 = vld [vmem:[%s181 + $0x18] sm:$0xff]
      %v208 = vld [vmem:[%s181 + $0x20] sm:$0xff]
      %v209 = vld [vmem:[%s181 + $0x28] sm:$0xff]
      %v210 = vld [vmem:[%s181 + $0x30] sm:$0xff]
      %v211 = vld [vmem:[%s181 + $0x38] sm:$0xff]
      %v212 = vld [vmem:[%s181 + $0x40] sm:$0xff]
      %v213 = vld [vmem:[%s181 + $0x48] sm:$0xff]
      %v214 = vld [vmem:[%s181 + $0x50] sm:$0xff]
      %v215 = vld [vmem:[%s181 + $0x58] sm:$0xff]
      %v216 = vld [vmem:[%s181 + $0x60] sm:$0xff]
      %v217 = vld [vmem:[%s181 + $0x68] sm:$0xff]
      %v218 = vld [vmem:[%s181 + $0x70] sm:$0xff]
      %v219 = vld [vmem:[%s181 + $0x78] sm:$0xff]
      %v220 = vld [vmem:[%s195] sm:$0xff]
      %v221 = vld [vmem:[%s195 + $0x8] sm:$0xff]
      %v222 = vld [vmem:[%s195 + $0x10] sm:$0xff]
      %v223 = vld [vmem:[%s195 + $0x18] sm:$0xff]
      %v224 = vld [vmem:[%s195 + $0x20] sm:$0xff]
      %v225 = vld [vmem:[%s195 + $0x28] sm:$0xff]
      %v226 = vld [vmem:[%s195 + $0x30] sm:$0xff]
      %v227 = vld [vmem:[%s195 + $0x38] sm:$0xff]
      %v228 = vld [vmem:[%s195 + $0x40] sm:$0xff]
      %v229 = vld [vmem:[%s195 + $0x48] sm:$0xff]
      %v230 = vld [vmem:[%s195 + $0x50] sm:$0xff]
      %v231 = vld [vmem:[%s195 + $0x58] sm:$0xff]
      %v232 = vld [vmem:[%s195 + $0x60] sm:$0xff]
      %v233 = vld [vmem:[%s195 + $0x68] sm:$0xff]
      %v234 = vld [vmem:[%s195 + $0x70] sm:$0xff]
      %v235 = vld [vmem:[%s195 + $0x78] sm:$0xff]
      %vm236 = vcmask 80896
      %v237 = vsel %vm236, %v204, -inf
      %238 = vmax.xlane.f32.xlu0 %v237
      %v239 = vpop.xlane.xlu0 %238
      %v240 = vsel %vm236, %v205, -inf
      %241 = vmax.xlane.f32.xlu0 %v240
      %v242 = vpop.xlane.xlu0 %241
      %v243 = vsel %vm236, %v206, -inf
      %244 = vmax.xlane.f32.xlu0 %v243
      %v245 = vpop.xlane.xlu0 %244
      %v246 = vsel %vm236, %v207, -inf
      %247 = vmax.xlane.f32.xlu0 %v246
      %v248 = vpop.xlane.xlu0 %247
      %v249 = vsel %vm236, %v208, -inf
      %250 = vmax.xlane.f32.xlu0 %v249
      %v251 = vpop.xlane.xlu0 %250
      %v252 = vsel %vm236, %v209, -inf
      %253 = vmax.xlane.f32.xlu0 %v252
      %v254 = vpop.xlane.xlu0 %253
      %v255 = vsel %vm236, %v210, -inf
      %256 = vmax.xlane.f32.xlu0 %v255
      %v257 = vpop.xlane.xlu0 %256
      %v258 = vsel %vm236, %v211, -inf
      %259 = vmax.xlane.f32.xlu0 %v258
      %v260 = vpop.xlane.xlu0 %259
      %v261 = vsel %vm236, %v212, -inf
      %262 = vmax.xlane.f32.xlu0 %v261
      %v263 = vpop.xlane.xlu0 %262
      %v264 = vsel %vm236, %v213, -inf
      %265 = vmax.xlane.f32.xlu0 %v264
      %v266 = vpop.xlane.xlu0 %265
      %v267 = vsel %vm236, %v214, -inf
      %268 = vmax.xlane.f32.xlu0 %v267
      %v269 = vpop.xlane.xlu0 %268
      %v270 = vsel %vm236, %v215, -inf
      %271 = vmax.xlane.f32.xlu0 %v270
      %v272 = vpop.xlane.xlu0 %271
      %v273 = vsel %vm236, %v216, -inf
      %274 = vmax.xlane.f32.xlu0 %v273
      %v275 = vpop.xlane.xlu0 %274
      %v276 = vsel %vm236, %v217, -inf
      %277 = vmax.xlane.f32.xlu0 %v276
      %v278 = vpop.xlane.xlu0 %277
      %v279 = vsel %vm236, %v218, -inf
      %280 = vmax.xlane.f32.xlu0 %v279
      %v281 = vpop.xlane.xlu0 %280
      %v282 = vsel %vm236, %v219, -inf
      %283 = vmax.xlane.f32.xlu0 %v282
      %v284 = vpop.xlane.xlu0 %283
      %v285 = vsub.f32 %v204, %v239
      %v286 = vsub.f32 %v205, %v242
      %v287 = vsub.f32 %v206, %v245
      %v288 = vsub.f32 %v207, %v248
      %v289 = vsub.f32 %v208, %v251
      %v290 = vsub.f32 %v209, %v254
      %v291 = vsub.f32 %v210, %v257
      %v292 = vsub.f32 %v211, %v260
      %v293 = vsub.f32 %v212, %v263
      %v294 = vsub.f32 %v213, %v266
      %v295 = vsub.f32 %v214, %v269
      %v296 = vsub.f32 %v215, %v272
      %v297 = vsub.f32 %v216, %v275
      %v298 = vsub.f32 %v217, %v278
      %v299 = vsub.f32 %v218, %v281
      %v300 = vsub.f32 %v219, %v284
      %v301 = vmul.f32 %v285, 1.442695
      %v302 = vpow.pop %v301
      %v303 = vmul.f32 %v286, 1.442695
      %v304 = vpow.pop %v303
      %v305 = vmul.f32 %v287, 1.442695
      %v306 = vpow.pop %v305
      %v307 = vmul.f32 %v288, 1.442695
      %v308 = vpow.pop %v307
      %v309 = vmul.f32 %v289, 1.442695
      %v310 = vpow.pop %v309
      %v311 = vmul.f32 %v290, 1.442695
      %v312 = vpow.pop %v311
      %v313 = vmul.f32 %v291, 1.442695
      %v314 = vpow.pop %v313
      %v315 = vmul.f32 %v292, 1.442695
      %v316 = vpow.pop %v315
      %v317 = vmul.f32 %v293, 1.442695
      %v318 = vpow.pop %v317
      %v319 = vmul.f32 %v294, 1.442695
      %v320 = vpow.pop %v319
      %v321 = vmul.f32 %v295, 1.442695
      %v322 = vpow.pop %v321
      %v323 = vmul.f32 %v296, 1.442695
      %v324 = vpow.pop %v323
      %v325 = vmul.f32 %v297, 1.442695
      %v326 = vpow.pop %v325
      %v327 = vmul.f32 %v298, 1.442695
      %v328 = vpow.pop %v327
      %v329 = vmul.f32 %v299, 1.442695
      %v330 = vpow.pop %v329
      %v331 = vmul.f32 %v300, 1.442695
      %v332 = vpow.pop %v331
      %v333 = vsel %vm236, %v302, 0.0
      %334 = vadd.xlane.f32.xlu0 %v333
      %v335 = vpop.xlane.xlu0 %334
      %v336 = vsel %vm236, %v304, 0.0
      %337 = vadd.xlane.f32.xlu0 %v336
      %v338 = vpop.xlane.xlu0 %337
      %v339 = vsel %vm236, %v306, 0.0
      %340 = vadd.xlane.f32.xlu0 %v339
      %v341 = vpop.xlane.xlu0 %340
      %v342 = vsel %vm236, %v308, 0.0
      %343 = vadd.xlane.f32.xlu0 %v342
      %v344 = vpop.xlane.xlu0 %343
      %v345 = vsel %vm236, %v310, 0.0
      %346 = vadd.xlane.f32.xlu0 %v345
      %v347 = vpop.xlane.xlu0 %346
      %v348 = vsel %vm236, %v312, 0.0
      %349 = vadd.xlane.f32.xlu0 %v348
      %v350 = vpop.xlane.xlu0 %349
      %v351 = vsel %vm236, %v314, 0.0
      %352 = vadd.xlane.f32.xlu0 %v351
      %v353 = vpop.xlane.xlu0 %352
      %v354 = vsel %vm236, %v316, 0.0
      %355 = vadd.xlane.f32.xlu0 %v354
      %v356 = vpop.xlane.xlu0 %355
      %v357 = vsel %vm236, %v318, 0.0
      %358 = vadd.xlane.f32.xlu0 %v357
      %v359 = vpop.xlane.xlu0 %358
      %v360 = vsel %vm236, %v320, 0.0
      %361 = vadd.xlane.f32.xlu0 %v360
      %v362 = vpop.xlane.xlu0 %361
      %v363 = vsel %vm236, %v322, 0.0
      %364 = vadd.xlane.f32.xlu0 %v363
      %v365 = vpop.xlane.xlu0 %364
      %v366 = vsel %vm236, %v324, 0.0
      %367 = vadd.xlane.f32.xlu0 %v366
      %v368 = vpop.xlane.xlu0 %367
      %v369 = vsel %vm236, %v326, 0.0
      %370 = vadd.xlane.f32.xlu0 %v369
      %v371 = vpop.xlane.xlu0 %370
      %v372 = vsel %vm236, %v328, 0.0
      %373 = vadd.xlane.f32.xlu0 %v372
      %v374 = vpop.xlane.xlu0 %373
      %v375 = vsel %vm236, %v330, 0.0
      %376 = vadd.xlane.f32.xlu0 %v375
      %v377 = vpop.xlane.xlu0 %376
      %v378 = vsel %vm236, %v332, 0.0
      %379 = vadd.xlane.f32.xlu0 %v378
      %v380 = vpop.xlane.xlu0 %379
      %v381 = vlog2.pop %v335
      %v382 = vmul.f32 %v381, 0.6931472
      %v383 = vlog2.pop %v338
      %v384 = vmul.f32 %v383, 0.6931472
      %v385 = vlog2.pop %v341
      %v386 = vmul.f32 %v385, 0.6931472
      %v387 = vlog2.pop %v344
      %v388 = vmul.f32 %v387, 0.6931472
      %v389 = vlog2.pop %v347
      %v390 = vmul.f32 %v389, 0.6931472
      %v391 = vlog2.pop %v350
      %v392 = vmul.f32 %v391, 0.6931472
      %v393 = vlog2.pop %v353
      %v394 = vmul.f32 %v393, 0.6931472
      %v395 = vlog2.pop %v356
      %v396 = vmul.f32 %v395, 0.6931472
      %v397 = vlog2.pop %v359
      %v398 = vmul.f32 %v397, 0.6931472
      %v399 = vlog2.pop %v362
      %v400 = vmul.f32 %v399, 0.6931472
      %v401 = vlog2.pop %v365
      %v402 = vmul.f32 %v401, 0.6931472
      %v403 = vlog2.pop %v368
      %v404 = vmul.f32 %v403, 0.6931472
      %v405 = vlog2.pop %v371
      %v406 = vmul.f32 %v405, 0.6931472
      %v407 = vlog2.pop %v374
      %v408 = vmul.f32 %v407, 0.6931472
      %v409 = vlog2.pop %v377
      %v410 = vmul.f32 %v409, 0.6931472
      %v411 = vlog2.pop %v380
      %v412 = vmul.f32 %v411, 0.6931472
      %v413 = vlaneseq
      %v414 = vand.u32 %v413, 127
      %415 = vset.pattern.permute.xlu0 0
      %416 = vperm.xlu0 %415, %v220
      %v417 = vpop.permute.xlu0 %416
      %418 = vset.pattern.permute.xlu0 0
      %419 = vperm.xlu0 %418, %v221
      %v420 = vpop.permute.xlu0 %419
      %421 = vset.pattern.permute.xlu0 0
      %422 = vperm.xlu0 %421, %v222
      %v423 = vpop.permute.xlu0 %422
      %424 = vset.pattern.permute.xlu0 0
      %425 = vperm.xlu0 %424, %v223
      %v426 = vpop.permute.xlu0 %425
      %427 = vset.pattern.permute.xlu0 0
      %428 = vperm.xlu0 %427, %v224
      %v429 = vpop.permute.xlu0 %428
      %430 = vset.pattern.permute.xlu0 0
      %431 = vperm.xlu0 %430, %v225
      %v432 = vpop.permute.xlu0 %431
      %433 = vset.pattern.permute.xlu0 0
      %434 = vperm.xlu0 %433, %v226
      %v435 = vpop.permute.xlu0 %434
      %436 = vset.pattern.permute.xlu0 0
      %437 = vperm.xlu0 %436, %v227
      %v438 = vpop.permute.xlu0 %437
      %439 = vset.pattern.permute.xlu0 0
      %440 = vperm.xlu0 %439, %v228
      %v441 = vpop.permute.xlu0 %440
      %442 = vset.pattern.permute.xlu0 0
      %443 = vperm.xlu0 %442, %v229
      %v444 = vpop.permute.xlu0 %443
      %445 = vset.pattern.permute.xlu0 0
      %446 = vperm.xlu0 %445, %v230
      %v447 = vpop.permute.xlu0 %446
      %448 = vset.pattern.permute.xlu0 0
      %449 = vperm.xlu0 %448, %v231
      %v450 = vpop.permute.xlu0 %449
      %451 = vset.pattern.permute.xlu0 0
      %452 = vperm.xlu0 %451, %v232
      %v453 = vpop.permute.xlu0 %452
      %454 = vset.pattern.permute.xlu0 0
      %455 = vperm.xlu0 %454, %v233
      %v456 = vpop.permute.xlu0 %455
      %457 = vset.pattern.permute.xlu0 0
      %458 = vperm.xlu0 %457, %v234
      %v459 = vpop.permute.xlu0 %458
      %460 = vset.pattern.permute.xlu0 0
      %461 = vperm.xlu0 %460, %v235
      %v462 = vpop.permute.xlu0 %461
      %vm463 = vcmp.eq.s32.totalorder %v414, %v417
      %vm464 = vcmp.eq.s32.totalorder %v414, %v420
      %vm465 = vcmp.eq.s32.totalorder %v414, %v423
      %vm466 = vcmp.eq.s32.totalorder %v414, %v426
      %vm467 = vcmp.eq.s32.totalorder %v414, %v429
      %vm468 = vcmp.eq.s32.totalorder %v414, %v432
      %vm469 = vcmp.eq.s32.totalorder %v414, %v435
      %vm470 = vcmp.eq.s32.totalorder %v414, %v438
      %vm471 = vcmp.eq.s32.totalorder %v414, %v441
      %vm472 = vcmp.eq.s32.totalorder %v414, %v444
      %vm473 = vcmp.eq.s32.totalorder %v414, %v447
      %vm474 = vcmp.eq.s32.totalorder %v414, %v450
      %vm475 = vcmp.eq.s32.totalorder %v414, %v453
      %vm476 = vcmp.eq.s32.totalorder %v414, %v456
      %vm477 = vcmp.eq.s32.totalorder %v414, %v459
      %vm478 = vcmp.eq.s32.totalorder %v414, %v462
      %v479 = vsel %vm463, %v285, 0.0
      %v480 = vsel %vm464, %v286, 0.0
      %v481 = vsel %vm465, %v287, 0.0
      %v482 = vsel %vm466, %v288, 0.0
      %v483 = vsel %vm467, %v289, 0.0
      %v484 = vsel %vm468, %v290, 0.0
      %v485 = vsel %vm469, %v291, 0.0
      %v486 = vsel %vm470, %v292, 0.0
      %v487 = vsel %vm471, %v293, 0.0
      %v488 = vsel %vm472, %v294, 0.0
      %v489 = vsel %vm473, %v295, 0.0
      %v490 = vsel %vm474, %v296, 0.0
      %v491 = vsel %vm475, %v297, 0.0
      %v492 = vsel %vm476, %v298, 0.0
      %v493 = vsel %vm477, %v299, 0.0
      %v494 = vsel %vm478, %v300, 0.0
      %v495 = vsel %vm236, %v479, 0.0
      %496 = vadd.xlane.f32.xlu0 %v495
      %v497 = vpop.xlane.xlu0 %496
      %v498 = vsel %vm236, %v480, 0.0
      %499 = vadd.xlane.f32.xlu0 %v498
      %v500 = vpop.xlane.xlu0 %499
      %v501 = vsel %vm236, %v481, 0.0
      %502 = vadd.xlane.f32.xlu0 %v501
      %v503 = vpop.xlane.xlu0 %502
      %v504 = vsel %vm236, %v482, 0.0
      %505 = vadd.xlane.f32.xlu0 %v504
      %v506 = vpop.xlane.xlu0 %505
      %v507 = vsel %vm236, %v483, 0.0
      %508 = vadd.xlane.f32.xlu0 %v507
      %v509 = vpop.xlane.xlu0 %508
      %v510 = vsel %vm236, %v484, 0.0
      %511 = vadd.xlane.f32.xlu0 %v510
      %v512 = vpop.xlane.xlu0 %511
      %v513 = vsel %vm236, %v485, 0.0
      %514 = vadd.xlane.f32.xlu0 %v513
      %v515 = vpop.xlane.xlu0 %514
      %v516 = vsel %vm236, %v486, 0.0
      %517 = vadd.xlane.f32.xlu0 %v516
      %v518 = vpop.xlane.xlu0 %517
      %v519 = vsel %vm236, %v487, 0.0
      %520 = vadd.xlane.f32.xlu0 %v519
      %v521 = vpop.xlane.xlu0 %520
      %v522 = vsel %vm236, %v488, 0.0
      %523 = vadd.xlane.f32.xlu0 %v522
      %v524 = vpop.xlane.xlu0 %523
      %v525 = vsel %vm236, %v489, 0.0
      %526 = vadd.xlane.f32.xlu0 %v525
      %v527 = vpop.xlane.xlu0 %526
      %v528 = vsel %vm236, %v490, 0.0
      %529 = vadd.xlane.f32.xlu0 %v528
      %v530 = vpop.xlane.xlu0 %529
      %v531 = vsel %vm236, %v491, 0.0
      %532 = vadd.xlane.f32.xlu0 %v531
      %v533 = vpop.xlane.xlu0 %532
      %v534 = vsel %vm236, %v492, 0.0
      %535 = vadd.xlane.f32.xlu0 %v534
      %v536 = vpop.xlane.xlu0 %535
      %v537 = vsel %vm236, %v493, 0.0
      %538 = vadd.xlane.f32.xlu0 %v537
      %v539 = vpop.xlane.xlu0 %538
      %v540 = vsel %vm236, %v494, 0.0
      %541 = vadd.xlane.f32.xlu0 %v540
      %v542 = vpop.xlane.xlu0 %541
      %v543 = vsub.f32 %v382, %v497
      %v544 = vsub.f32 %v384, %v500
      %v545 = vsub.f32 %v386, %v503
      %v546 = vsub.f32 %v388, %v506
      %v547 = vsub.f32 %v390, %v509
      %v548 = vsub.f32 %v392, %v512
      %v549 = vsub.f32 %v394, %v515
      %v550 = vsub.f32 %v396, %v518
      %v551 = vsub.f32 %v398, %v521
      %v552 = vsub.f32 %v400, %v524
      %v553 = vsub.f32 %v402, %v527
      %v554 = vsub.f32 %v404, %v530
      %v555 = vsub.f32 %v406, %v533
      %v556 = vsub.f32 %v408, %v536
      %v557 = vsub.f32 %v410, %v539
      %v558 = vsub.f32 %v412, %v542
      %s559 = smul.u32 %s13, 128
      %v560 = vlaneseq
      %v561 = vshrl.u32 %v560, 7
      %v562 = vadd.s32 %v561, 8
      %v563 = vadd.s32 %v561, 16
      %v564 = vadd.s32 %v561, 24
      %v565 = vadd.s32 %v561, 32
      %v566 = vadd.s32 %v561, 40
      %v567 = vadd.s32 %v561, 48
      %v568 = vadd.s32 %v561, 56
      %v569 = vadd.s32 %v561, 64
      %v570 = vadd.s32 %v561, 72
      %v571 = vadd.s32 %v561, 80
      %v572 = vadd.s32 %v561, 88
      %v573 = vadd.s32 %v561, 96
      %v574 = vadd.s32 %v561, 104
      %v575 = vadd.s32 %v561, 112
      %v576 = vadd.s32 %v561, 120
      %v577 = vstv %s559
      %v578 = vadd.s32 %v577, %v561
      %v579 = vadd.s32 %v577, %v562
      %v580 = vadd.s32 %v577, %v563
      %v581 = vadd.s32 %v577, %v564
      %v582 = vadd.s32 %v577, %v565
      %v583 = vadd.s32 %v577, %v566
      %v584 = vadd.s32 %v577, %v567
      %v585 = vadd.s32 %v577, %v568
      %v586 = vadd.s32 %v577, %v569
      %v587 = vadd.s32 %v577, %v570
      %v588 = vadd.s32 %v577, %v571
      %v589 = vadd.s32 %v577, %v572
      %v590 = vadd.s32 %v577, %v573
      %v591 = vadd.s32 %v577, %v574
      %v592 = vadd.s32 %v577, %v575
      %v593 = vadd.s32 %v577, %v576
      %vm594 = vcmp.lt.s32.totalorder %v578, 520
      %vm595 = vcmp.lt.s32.totalorder %v579, 520
      %vm596 = vcmp.lt.s32.totalorder %v580, 520
      %vm597 = vcmp.lt.s32.totalorder %v581, 520
      %vm598 = vcmp.lt.s32.totalorder %v582, 520
      %vm599 = vcmp.lt.s32.totalorder %v583, 520
      %vm600 = vcmp.lt.s32.totalorder %v584, 520
      %vm601 = vcmp.lt.s32.totalorder %v585, 520
      %vm602 = vcmp.lt.s32.totalorder %v586, 520
      %vm603 = vcmp.lt.s32.totalorder %v587, 520
      %vm604 = vcmp.lt.s32.totalorder %v588, 520
      %vm605 = vcmp.lt.s32.totalorder %v589, 520
      %vm606 = vcmp.lt.s32.totalorder %v590, 520
      %vm607 = vcmp.lt.s32.totalorder %v591, 520
      %vm608 = vcmp.lt.s32.totalorder %v592, 520
      %vm609 = vcmp.lt.s32.totalorder %v593, 520
      %v610 = vsel %vm594, %v543, 0.0
      %v611 = vsel %vm595, %v544, 0.0
      %v612 = vsel %vm596, %v545, 0.0
      %v613 = vsel %vm597, %v546, 0.0
      %v614 = vsel %vm598, %v547, 0.0
      %v615 = vsel %vm599, %v548, 0.0
      %v616 = vsel %vm600, %v549, 0.0
      %v617 = vsel %vm601, %v550, 0.0
      %v618 = vsel %vm602, %v551, 0.0
      %v619 = vsel %vm603, %v552, 0.0
      %v620 = vsel %vm604, %v553, 0.0
      %v621 = vsel %vm605, %v554, 0.0
      %v622 = vsel %vm606, %v555, 0.0
      %v623 = vsel %vm607, %v556, 0.0
      %v624 = vsel %vm608, %v557, 0.0
      %v625 = vsel %vm609, %v558, 0.0
      %v626 = vadd.f32 %v610, %v611
      %v627 = vadd.f32 %v626, %v612
      %v628 = vadd.f32 %v627, %v613
      %v629 = vadd.f32 %v628, %v614
      %v630 = vadd.f32 %v629, %v615
      %v631 = vadd.f32 %v630, %v616
      %v632 = vadd.f32 %v631, %v617
      %v633 = vadd.f32 %v632, %v618
      %v634 = vadd.f32 %v633, %v619
      %v635 = vadd.f32 %v634, %v620
      %v636 = vadd.f32 %v635, %v621
      %v637 = vadd.f32 %v636, %v622
      %v638 = vadd.f32 %v637, %v623
      %v639 = vadd.f32 %v638, %v624
      %v640 = vadd.f32 %v639, %v625
      %v641 = vrot.slane %v640, 4
      %v642 = vadd.f32 %v640, %v641
      %v643 = vrot.slane %v642, 2
      %v644 = vadd.f32 %v642, %v643
      %v645 = vrot.slane %v644, 1
      %v646 = vadd.f32 %v644, %v645
      %vm647 = vcmask 0
      %648 = vst.msk [vmem:[%s203] sm:$0x1] %vm647, %v646
      %p649 = scmp.lt.s32.totalorder %s13, 4
      %s650 = scalar_select %p649, %s13, 4
      %s651 = scalar_lea.vmem %s2, %s650
      // Predicated region
      $region29: #{tpu_custom_call.1} parent=27 // pred_check
        %p652 = pneg %p83
      $region30: #{tpu_custom_call.1} parent=27 // pred_check_branch
        %654 = sbr.rel (%p652) target = $region32
      $region31: #{tpu_custom_call.1} parent=27 // pred_region
        _
      $region32: #{tpu_custom_call.1} parent=27 // pred_fallthru
        _
    $region28: #{tpu_custom_call.1} parent=5 // pred_fallthru
      _
    %p655 = scmp.le.s32.totalorder 2, %s8
    // Predicated region
    $region33: #{tpu_custom_call.1} parent=5 // pred_check
      %p656 = pneg %p655
    $region34: #{tpu_custom_call.1} parent=5 // pred_check_branch
      %658 = sbr.rel (%p656) target = $region36
    $region35: #{tpu_custom_call.1} parent=5 // pred_region
      %s659 = ssub.s32 %s8, 2
      // Predicated region
      $region37: #{tpu_custom_call.1} parent=35 // pred_check
        %p660 = pneg %p89
      $region38: #{tpu_custom_call.1} parent=35 // pred_check_branch
        %662 = sbr.rel (%p660) target = $region40
      $region39: #{tpu_custom_call.1} parent=35 // pred_region
        %p663 = scmp.lt.s32.totalorder %s14, 4
        %s664 = scalar_select %p663, %s14, 4
        %s665 = scalar_lea.vmem %s2, %s664
      $region40: #{tpu_custom_call.1} parent=35 // pred_fallthru
        _
    $region36: #{tpu_custom_call.1} parent=5 // pred_fallthru
      _
  $region6: #{tpu_custom_call.1} parent=0 // loop_footer
    %s12 = sadd.s32 1, %s8
  $region7: #{tpu_custom_call.1} parent=0 // loop_footer_branch
    %7 = sbr.rel target = $region3
  $region8: #{tpu_custom_call.1} parent=0 // loop_exit
    _

</llo_original>
